<compile_context>
chip_gen: v6e
topology: v6e:2x2x1
jax: 0.10.0
libtpu: 0.0.40
codegen_flags: <defaults>
</compile_context>

<pallas_src>
import jax
import jax.numpy as jnp
from jax.experimental import pallas as pl
from jax.experimental.pallas import tpu as pltpu


# ---------------------------------------------------------------------------
# Kernel: plain linear head on pre-folded parameters
#   o = x @ W' + b'        (x, W' in bf16; accumulate and store in f32)
# ---------------------------------------------------------------------------
def _linear_kernel(x_ref, w_ref, b_ref, o_ref):
    # x_ref: (tm, D_pad) bf16   w_ref: (D_pad, K_pad) bf16
    # b_ref: (1, K_pad)  f32    o_ref: (tm, K_pad)    f32 (lane-dense, unmasked)
    o_ref[...] = (
        jnp.dot(x_ref[...], w_ref[...], preferred_element_type=jnp.float32)
        + b_ref[...]
    )


def _round_up(v, m):
    return ((v + m - 1) // m) * m


def _pick_row_tile(n_pad):
    """Largest row tile that divides n_pad (<=1024), preferring >=2 grid steps
    once tiles reach MXU size so v7x's 2 TensorCores both get work."""
    candidates = [t for t in (1024, 512, 256, 128, 64, 32, 16) if n_pad % t == 0]
    if not candidates:
        return n_pad
    for t in candidates:
        if n_pad // t >= 2 and t >= 128:
            return t
    return candidates[0]


def fused_linear(x_p, w_p, b_p):
    """x_p: (N_pad, D_pad) bf16, w_p: (D_pad, K_pad) bf16, b_p: (1, K_pad) f32."""
    n_pad, d_pad = x_p.shape
    k_pad = w_p.shape[1]
    tm = _pick_row_tile(n_pad)

    grid_spec = pl.GridSpec(
        grid=(n_pad // tm,),
        in_specs=[
            pl.BlockSpec((tm, d_pad), lambda i: (i, 0)),
            pl.BlockSpec((d_pad, k_pad), lambda i: (0, 0)),
            pl.BlockSpec((1, k_pad), lambda i: (0, 0)),
        ],
        out_specs=pl.BlockSpec((tm, k_pad), lambda i: (i, 0)),
    )
    return pl.pallas_call(
        _linear_kernel,
        out_shape=jax.ShapeDtypeStruct((n_pad, k_pad), jnp.float32),
        grid_spec=grid_spec,
        compiler_params=pltpu.CompilerParams(
            dimension_semantics=("parallel",),
        ),
    )(x_p, w_p, b_p)


# ---------------------------------------------------------------------------
# One-time prep: fold (x - mean)/std into the linear head, pad, cast.
# ---------------------------------------------------------------------------
def prepare_params(means, stds, w, b, hw):
    """means/stds: (C,), w: (D, K), b: (1, K), hw = H*W. Runs once."""
    d, k = w.shape
    inv = 1.0 / stds
    # NCHW flatten is channel-major: feature f belongs to channel f // (H*W).
    mean_vec = jnp.repeat(means, hw)          # (D,)
    inv_vec = jnp.repeat(inv, hw)             # (D,)
    w_fold = w * inv_vec[:, None]             # (D, K)  == diag(inv) @ W
    b_fold = b - jnp.dot(mean_vec * inv_vec, w)[None, :]   # (1, K)

    d_pad = _round_up(d, 128)
    k_pad = _round_up(k, 128)
    if d_pad != d or k_pad != k:
        w_fold = jnp.pad(w_fold, ((0, d_pad - d), (0, k_pad - k)))
        b_fold = jnp.pad(b_fold, ((0, 0), (0, k_pad - k)))
    return w_fold.astype(jnp.bfloat16), b_fold.astype(jnp.float32)


# ---------------------------------------------------------------------------
# Per-call forward (jit'd so reshape / pad / slice fuse around the kernel).
# ---------------------------------------------------------------------------
def model_norm_wrapper_forward(x, w_pad, b_pad, num_classes):
    n = x.shape[0]
    d = x.shape[1] * x.shape[2] * x.shape[3]
    d_pad = w_pad.shape[0]

    x_flat = x.reshape(n, d).astype(jnp.bfloat16)   # lane-dense: D = 768
    n_pad = _round_up(max(n, 16), 16)                # bf16 sublane packing
    pad_n, pad_d = n_pad - n, d_pad - d
    if pad_n or pad_d:                               # skip the pad when aligned
        x_flat = jnp.pad(x_flat, ((0, pad_n), (0, pad_d)))

    out_p = fused_linear(x_flat, w_pad, b_pad)       # (n_pad, K_pad) f32
    return out_p[:n, :num_classes]                   # fuses inside this jit


if __name__ == "__main__":
    key = jax.random.PRNGKey(0)
    kx, kw, kb = jax.random.split(key, 3)

    # Small shapes consistent with the module: NCHW with 3 channels (the
    # original module hard-codes means/stds.view(3,1,1)).
    N, C, H, W = 2, 3, 16, 16
    NUM_CLASSES = 10
    D = C * H * W

    x = jax.random.uniform(kx, (N, C, H, W), dtype=jnp.float32)

    # CIFAR-style per-channel statistics (deterministic, in-script).
    means = jnp.array([0.4914, 0.4822, 0.4465], dtype=jnp.float32)
    stds = jnp.array([0.2471, 0.2435, 0.2616], dtype=jnp.float32)

    # Deterministic synthetic inner-model parameters (flatten -> linear).
    w = jax.random.normal(kw, (D, NUM_CLASSES), dtype=jnp.float32) * 0.02
    b = jax.random.normal(kb, (1, NUM_CLASSES), dtype=jnp.float32) * 0.01

    # One-time fold + pad + cast, then a jitted per-call forward.
    w_pad, b_pad = prepare_params(means, stds, w, b, H * W)
    forward = jax.jit(model_norm_wrapper_forward, static_argnums=(3,))

    out = forward(x, w_pad, b_pad, NUM_CLASSES)
    out = jax.block_until_ready(out)

    # Reference check in plain JAX (un-fused, exactly as the PyTorch module).
    x_ref = (x - means.reshape(3, 1, 1)) / stds.reshape(3, 1, 1)
    ref = x_ref.reshape(N, -1) @ w + b
    assert out.shape == (N, NUM_CLASSES)
    assert jnp.allclose(out, ref, atol=5e-2, rtol=5e-2), "mismatch vs reference"

    print("KERNEL_OK")
</pallas_src>

<mosaic_0001>
module attributes {stable_mosaic.version = 11 : i64} {
  func.func @_linear_kernel(%arg0: i32, %arg1: memref<16x768xbf16, #tpu.memory_space<vmem>>, %arg2: memref<768x128xbf16, #tpu.memory_space<vmem>>, %arg3: memref<1x128xf32, #tpu.memory_space<vmem>>, %arg4: memref<16x128xf32, #tpu.memory_space<vmem>>) attributes {dimension_semantics = [#tpu.dimension_semantics<parallel>], iteration_bounds = array<i64: 1>, scalar_prefetch = 0 : i64, scratch_operands = 0 : i64, tpu.core_type = #tpu.core_type<tc>, window_params = [{transform_indices = @transform_0, window_bounds = array<i64: 16, 768>}, {pipeline_mode = #tpu.pipeline_mode<synchronous>, transform_indices = @transform_1, window_bounds = array<i64: 768, 128>}, {pipeline_mode = #tpu.pipeline_mode<synchronous>, transform_indices = @transform_2, window_bounds = array<i64: 1, 128>}, {transform_indices = @transform_3, window_bounds = array<i64: 16, 128>}]} {
    %c0 = arith.constant 0 : index
    %c0_0 = arith.constant 0 : index
    %0 = vector.load %arg1[%c0, %c0_0] : memref<16x768xbf16, #tpu.memory_space<vmem>>, vector<16x768xbf16>
    %c0_1 = arith.constant 0 : index
    %c0_2 = arith.constant 0 : index
    %1 = vector.load %arg2[%c0_1, %c0_2] : memref<768x128xbf16, #tpu.memory_space<vmem>>, vector<768x128xbf16>
    %cst = arith.constant dense<0.000000e+00> : vector<16x128xf32>
    %2 = tpu.matmul %0, %1, %cst {dimension_numbers = #tpu.dot_dimension_numbers<[1], [0], [0], [1], [0, 0, 1, 1], [], []>} : vector<16x768xbf16>, vector<768x128xbf16>, vector<16x128xf32> -> vector<16x128xf32>
    %c0_3 = arith.constant 0 : index
    %c0_4 = arith.constant 0 : index
    %3 = vector.load %arg3[%c0_3, %c0_4] : memref<1x128xf32, #tpu.memory_space<vmem>>, vector<1x128xf32>
    %4 = vector.broadcast %3 : vector<1x128xf32> to vector<16x128xf32>
    %5 = arith.addf %2, %4 : vector<16x128xf32>
    %c0_5 = arith.constant 0 : index
    %c0_6 = arith.constant 0 : index
    %6 = vector.load %arg4[%c0_5, %c0_6] : memref<16x128xf32, #tpu.memory_space<vmem>>, vector<16x128xf32>
    tpu.vector_store %arg4[%c0_5, %c0_6], %5 {strides = array<i32>} : memref<16x128xf32, #tpu.memory_space<vmem>>, vector<16x128xf32>,
    return
  }
  func.func @transform_0(%arg0: i32) -> (i32, i32) {
    %c0_i32 = arith.constant 0 : i32
    %c0_i32_0 = arith.constant 0 : i32
    return %arg0, %c0_i32 : i32, i32
  }
  func.func @transform_1(%arg0: i32) -> (i32, i32) {
    %c0_i32 = arith.constant 0 : i32
    %c0_i32_0 = arith.constant 0 : i32
    %c0_i32_1 = arith.constant 0 : i32
    return %c0_i32, %c0_i32_0 : i32, i32
  }
  func.func @transform_2(%arg0: i32) -> (i32, i32) {
    %c0_i32 = arith.constant 0 : i32
    %c0_i32_0 = arith.constant 0 : i32
    %c0_i32_1 = arith.constant 0 : i32
    return %c0_i32, %c0_i32_0 : i32, i32
  }
  func.func @transform_3(%arg0: i32) -> (i32, i32) {
    %c0_i32 = arith.constant 0 : i32
    %c0_i32_0 = arith.constant 0 : i32
    return %arg0, %c0_i32 : i32, i32
  }
}

</mosaic_0001>

<llo_original>
// kernel: model_norm_wrapper_forward.1
$region0: #{model_norm_wrapper_forward.1}
  #allocation0 [shape = 'u32[]', space=smem, size = 0x4, offset = 0x4, fixed_abs, tag = 'smem constant byte address 0x4 - core index']
  #allocation1 [shape = 'u32[144,128]{1,0:T(1,128)}', space=vmem, size = 0x12000, scoped, tag = 'internal scratch']
  %s0 = inlined_call_operand.vmem [shape: bf16[16,768], index: 0, kind: input, shape index: {}]
  %s1 = inlined_call_operand.hbm [shape: bf16[768,128], index: 1, kind: input, shape index: {}]
  %s2 = inlined_call_operand.vmem [shape: f32[1,128], index: 2, kind: input, shape index: {}]
  %s3 = inlined_call_operand.vmem [shape: f32[16,128], index: 3, kind: output, shape index: {}]
  %s4 = sld [smem:[#allocation0]]
  $region26: #{model_norm_wrapper_forward.1} parent=0
    _
  %s6 = ssub.s32 1, %s4
  %s7 = scalar_select 0, %s6, %s4
  $region1: #{model_norm_wrapper_forward.1} parent=0
    #allocation2 [shape = 'u8[196608]{0}', space=vmem, size = 0x30000, scoped, tag = 'input window, operand 1, single buffered']
    #allocation3 [shape = 's32[1]{0}', space=sflag, size = 0x4, scoped, tag = 'scoped memory for model_norm_wrapper_forward.1']
    %8 = vsyncpa [#allocation3], 0
    // Predicated region
    $region2: #{model_norm_wrapper_forward.1} parent=1 // pred_check
      _
    $region3: #{model_norm_wrapper_forward.1} parent=1 // pred_check_branch
      %10 = sbr.rel (0) target = $region5
    $region4: #{model_norm_wrapper_forward.1} parent=1 // pred_region
      _
    $region5: #{model_norm_wrapper_forward.1} parent=1 // pred_fallthru
      _
    // Predicated region
    $region6: #{model_norm_wrapper_forward.1} parent=1 // pred_check
      _
    $region7: #{model_norm_wrapper_forward.1} parent=1 // pred_check_branch
      %12 = sbr.rel (0) target = $region9
    $region8: #{model_norm_wrapper_forward.1} parent=1 // pred_region
      %s14 = ssub.s32 6144, 6144
      %15 = vsyncadd [#allocation3], %s14
      %s16 = sshll.u32 [#allocation2], 4
      %s17 = int_to_ptr.vmem [resolvable:$true] %s16
      %22 = dma.hbm_to_vmem [thread:$0]  %s1, 6144, %s17, [#allocation3], 64, 64, 4
    $region9: #{model_norm_wrapper_forward.1} parent=1 // pred_fallthru
      _
    // Predicated region
    $region10: #{model_norm_wrapper_forward.1} parent=1 // pred_check
      _
    $region11: #{model_norm_wrapper_forward.1} parent=1 // pred_check_branch
      %24 = sbr.rel (0) target = $region13
    $region12: #{model_norm_wrapper_forward.1} parent=1 // pred_region
      _
    $region13: #{model_norm_wrapper_forward.1} parent=1 // pred_fallthru
      _
    // Predicated region
    $region14: #{model_norm_wrapper_forward.1} parent=1 // pred_check
      _
    $region15: #{model_norm_wrapper_forward.1} parent=1 // pred_check_branch
      %26 = sbr.rel (0) target = $region17
    $region16: #{model_norm_wrapper_forward.1} parent=1 // pred_region
      %27 = dma.done [#allocation3], 6144
    $region17: #{model_norm_wrapper_forward.1} parent=1 // pred_fallthru
      _
    %v29 = vld [vmem:[%s0] sm:$0xff]
    %v30 = vld [vmem:[%s0 + $0x8] sm:$0xff]
    %v31 = vld [vmem:[%s0 + $0x10] sm:$0xff]
    %v32 = vld [vmem:[%s0 + $0x18] sm:$0xff]
    %v33 = vld [vmem:[%s0 + $0x20] sm:$0xff]
    %v34 = vld [vmem:[%s0 + $0x28] sm:$0xff]
    %v35 = vld [vmem:[#allocation2] sm:$0xf]
    %v36 = vld [vmem:[#allocation2 + $0x4] sm:$0xf]
    %v37 = vld [vmem:[#allocation2 + $0x8] sm:$0xf]
    %v38 = vld [vmem:[#allocation2 + $0xc] sm:$0xf]
    %v39 = vld [vmem:[#allocation2 + $0x10] sm:$0xf]
    %v40 = vld [vmem:[#allocation2 + $0x14] sm:$0xf]
    %v41 = vld [vmem:[#allocation2 + $0x18] sm:$0xf]
    %v42 = vld [vmem:[#allocation2 + $0x1c] sm:$0xf]
    %v43 = vld [vmem:[#allocation2 + $0x20] sm:$0xf]
    %v44 = vld [vmem:[#allocation2 + $0x24] sm:$0xf]
    %v45 = vld [vmem:[#allocation2 + $0x28] sm:$0xf]
    %v46 = vld [vmem:[#allocation2 + $0x2c] sm:$0xf]
    %v47 = vld [vmem:[#allocation2 + $0x30] sm:$0xf]
    %v48 = vld [vmem:[#allocation2 + $0x34] sm:$0xf]
    %v49 = vld [vmem:[#allocation2 + $0x38] sm:$0xf]
    %v50 = vld [vmem:[#allocation2 + $0x3c] sm:$0xf]
    %v51 = vld [vmem:[#allocation2 + $0x40] sm:$0xf]
    %v52 = vld [vmem:[#allocation2 + $0x44] sm:$0xf]
    %v53 = vld [vmem:[#allocation2 + $0x48] sm:$0xf]
    %v54 = vld [vmem:[#allocation2 + $0x4c] sm:$0xf]
    %v55 = vld [vmem:[#allocation2 + $0x50] sm:$0xf]
    %v56 = vld [vmem:[#allocation2 + $0x54] sm:$0xf]
    %v57 = vld [vmem:[#allocation2 + $0x58] sm:$0xf]
    %v58 = vld [vmem:[#allocation2 + $0x5c] sm:$0xf]
    %v59 = vld [vmem:[#allocation2 + $0x60] sm:$0xf]
    %v60 = vld [vmem:[#allocation2 + $0x64] sm:$0xf]
    %v61 = vld [vmem:[#allocation2 + $0x68] sm:$0xf]
    %v62 = vld [vmem:[#allocation2 + $0x6c] sm:$0xf]
    %v63 = vld [vmem:[#allocation2 + $0x70] sm:$0xf]
    %v64 = vld [vmem:[#allocation2 + $0x74] sm:$0xf]
    %v65 = vld [vmem:[#allocation2 + $0x78] sm:$0xf]
    %v66 = vld [vmem:[#allocation2 + $0x7c] sm:$0xf]
    %v67 = vld [vmem:[#allocation2 + $0x80] sm:$0xf]
    %v68 = vld [vmem:[#allocation2 + $0x84] sm:$0xf]
    %v69 = vld [vmem:[#allocation2 + $0x88] sm:$0xf]
    %v70 = vld [vmem:[#allocation2 + $0x8c] sm:$0xf]
    %v71 = vld [vmem:[#allocation2 + $0x90] sm:$0xf]
    %v72 = vld [vmem:[#allocation2 + $0x94] sm:$0xf]
    %v73 = vld [vmem:[#allocation2 + $0x98] sm:$0xf]
    %v74 = vld [vmem:[#allocation2 + $0x9c] sm:$0xf]
    %v75 = vld [vmem:[#allocation2 + $0xa0] sm:$0xf]
    %v76 = vld [vmem:[#allocation2 + $0xa4] sm:$0xf]
    %v77 = vld [vmem:[#allocation2 + $0xa8] sm:$0xf]
    %v78 = vld [vmem:[#allocation2 + $0xac] sm:$0xf]
    %v79 = vld [vmem:[#allocation2 + $0xb0] sm:$0xf]
    %v80 = vld [vmem:[#allocation2 + $0xb4] sm:$0xf]
    %v81 = vld [vmem:[#allocation2 + $0xb8] sm:$0xf]
    %v82 = vld [vmem:[#allocation2 + $0xbc] sm:$0xf]
    %v83 = vld [vmem:[#allocation2 + $0xc0] sm:$0xf]
    %v84 = vld [vmem:[#allocation2 + $0xc4] sm:$0xf]
    %v85 = vld [vmem:[#allocation2 + $0xc8] sm:$0xf]
    %v86 = vld [vmem:[#allocation2 + $0xcc] sm:$0xf]
    %v87 = vld [vmem:[#allocation2 + $0xd0] sm:$0xf]
    %v88 = vld [vmem:[#allocation2 + $0xd4] sm:$0xf]
    %v89 = vld [vmem:[#allocation2 + $0xd8] sm:$0xf]
    %v90 = vld [vmem:[#allocation2 + $0xdc] sm:$0xf]
    %v91 = vld [vmem:[#allocation2 + $0xe0] sm:$0xf]
    %v92 = vld [vmem:[#allocation2 + $0xe4] sm:$0xf]
    %v93 = vld [vmem:[#allocation2 + $0xe8] sm:$0xf]
    %v94 = vld [vmem:[#allocation2 + $0xec] sm:$0xf]
    %v95 = vld [vmem:[#allocation2 + $0xf0] sm:$0xf]
    %v96 = vld [vmem:[#allocation2 + $0xf4] sm:$0xf]
    %v97 = vld [vmem:[#allocation2 + $0xf8] sm:$0xf]
    %v98 = vld [vmem:[#allocation2 + $0xfc] sm:$0xf]
    %v99 = vld [vmem:[#allocation2 + $0x100] sm:$0xf]
    %v100 = vld [vmem:[#allocation2 + $0x104] sm:$0xf]
    %v101 = vld [vmem:[#allocation2 + $0x108] sm:$0xf]
    %v102 = vld [vmem:[#allocation2 + $0x10c] sm:$0xf]
    %v103 = vld [vmem:[#allocation2 + $0x110] sm:$0xf]
    %v104 = vld [vmem:[#allocation2 + $0x114] sm:$0xf]
    %v105 = vld [vmem:[#allocation2 + $0x118] sm:$0xf]
    %v106 = vld [vmem:[#allocation2 + $0x11c] sm:$0xf]
    %v107 = vld [vmem:[#allocation2 + $0x120] sm:$0xf]
    %v108 = vld [vmem:[#allocation2 + $0x124] sm:$0xf]
    %v109 = vld [vmem:[#allocation2 + $0x128] sm:$0xf]
    %v110 = vld [vmem:[#allocation2 + $0x12c] sm:$0xf]
    %v111 = vld [vmem:[#allocation2 + $0x130] sm:$0xf]
    %v112 = vld [vmem:[#allocation2 + $0x134] sm:$0xf]
    %v113 = vld [vmem:[#allocation2 + $0x138] sm:$0xf]
    %v114 = vld [vmem:[#allocation2 + $0x13c] sm:$0xf]
    %v115 = vld [vmem:[#allocation2 + $0x140] sm:$0xf]
    %v116 = vld [vmem:[#allocation2 + $0x144] sm:$0xf]
    %v117 = vld [vmem:[#allocation2 + $0x148] sm:$0xf]
    %v118 = vld [vmem:[#allocation2 + $0x14c] sm:$0xf]
    %v119 = vld [vmem:[#allocation2 + $0x150] sm:$0xf]
    %v120 = vld [vmem:[#allocation2 + $0x154] sm:$0xf]
    %v121 = vld [vmem:[#allocation2 + $0x158] sm:$0xf]
    %v122 = vld [vmem:[#allocation2 + $0x15c] sm:$0xf]
    %v123 = vld [vmem:[#allocation2 + $0x160] sm:$0xf]
    %v124 = vld [vmem:[#allocation2 + $0x164] sm:$0xf]
    %v125 = vld [vmem:[#allocation2 + $0x168] sm:$0xf]
    %v126 = vld [vmem:[#allocation2 + $0x16c] sm:$0xf]
    %v127 = vld [vmem:[#allocation2 + $0x170] sm:$0xf]
    %v128 = vld [vmem:[#allocation2 + $0x174] sm:$0xf]
    %v129 = vld [vmem:[#allocation2 + $0x178] sm:$0xf]
    %v130 = vld [vmem:[#allocation2 + $0x17c] sm:$0xf]
    %v131 = vld [vmem:[%s2] sm:$0x1]
    %v133 = vlaneseq
    %v134 = vshrl.u32 %v133, 7
    %v135 = vsub.s32 0, %v134
    %v136 = vrot.slane %v131, %v135
    %v144 = vunpack.c.l.b16 %v29
    %v145 = vunpack.c.h.b16 %v29
    %v146 = vunpack.c.l.b16 %v30
    %v147 = vunpack.c.h.b16 %v30
    %v148 = vunpack.c.l.b16 %v31
    %v149 = vunpack.c.h.b16 %v31
    %v150 = vunpack.c.l.b16 %v32
    %v151 = vunpack.c.h.b16 %v32
    %v152 = vunpack.c.l.b16 %v33
    %v153 = vunpack.c.h.b16 %v33
    %v154 = vunpack.c.l.b16 %v34
    %v155 = vunpack.c.h.b16 %v34
    %v156 = vpack.c.b16 %v150, %v144
    %v157 = vpack.c.b16 %v151, %v145
    %v158 = vpack.c.b16 %v152, %v146
    %v159 = vpack.c.b16 %v153, %v147
    %v160 = vpack.c.b16 %v154, %v148
    %v161 = vpack.c.b16 %v155, %v149
    %v264 = vunpack.c.l.b16 %v35
    %v265 = vunpack.c.l.b16 %v36
    %v266 = vunpack.c.l.b16 %v37
    %v267 = vunpack.c.l.b16 %v38
    %v268 = vunpack.c.l.b16 %v39
    %v269 = vunpack.c.l.b16 %v40
    %v270 = vunpack.c.l.b16 %v41
    %v271 = vunpack.c.l.b16 %v42
    %v272 = vunpack.c.l.b16 %v43
    %v273 = vunpack.c.l.b16 %v44
    %v274 = vunpack.c.l.b16 %v45
    %v275 = vunpack.c.l.b16 %v46
    %v276 = vunpack.c.l.b16 %v47
    %v277 = vunpack.c.l.b16 %v48
    %v278 = vunpack.c.l.b16 %v49
    %v279 = vunpack.c.l.b16 %v50
    %v280 = vunpack.c.l.b16 %v51
    %v281 = vunpack.c.l.b16 %v52
    %v282 = vunpack.c.l.b16 %v53
    %v283 = vunpack.c.l.b16 %v54
    %v284 = vunpack.c.l.b16 %v55
    %v285 = vunpack.c.l.b16 %v56
    %v286 = vunpack.c.l.b16 %v57
    %v287 = vunpack.c.l.b16 %v58
    %v288 = vunpack.c.l.b16 %v59
    %v289 = vunpack.c.l.b16 %v60
    %v290 = vunpack.c.l.b16 %v61
    %v291 = vunpack.c.l.b16 %v62
    %v292 = vunpack.c.l.b16 %v63
    %v293 = vunpack.c.l.b16 %v64
    %v294 = vunpack.c.l.b16 %v65
    %v295 = vunpack.c.l.b16 %v66
    %v296 = vunpack.c.l.b16 %v67
    %v297 = vunpack.c.l.b16 %v68
    %v298 = vunpack.c.l.b16 %v69
    %v299 = vunpack.c.l.b16 %v70
    %v300 = vunpack.c.l.b16 %v71
    %v301 = vunpack.c.l.b16 %v72
    %v302 = vunpack.c.l.b16 %v73
    %v303 = vunpack.c.l.b16 %v74
    %v304 = vunpack.c.l.b16 %v75
    %v305 = vunpack.c.l.b16 %v76
    %v306 = vunpack.c.l.b16 %v77
    %v307 = vunpack.c.l.b16 %v78
    %v308 = vunpack.c.l.b16 %v79
    %v309 = vunpack.c.l.b16 %v80
    %v310 = vunpack.c.l.b16 %v81
    %v311 = vunpack.c.l.b16 %v82
    %v312 = vunpack.c.l.b16 %v83
    %v313 = vunpack.c.l.b16 %v84
    %v314 = vunpack.c.l.b16 %v85
    %v315 = vunpack.c.l.b16 %v86
    %v316 = vunpack.c.l.b16 %v87
    %v317 = vunpack.c.l.b16 %v88
    %v318 = vunpack.c.l.b16 %v89
    %v319 = vunpack.c.l.b16 %v90
    %v320 = vunpack.c.l.b16 %v91
    %v321 = vunpack.c.l.b16 %v92
    %v322 = vunpack.c.l.b16 %v93
    %v323 = vunpack.c.l.b16 %v94
    %v324 = vunpack.c.l.b16 %v95
    %v325 = vunpack.c.l.b16 %v96
    %v326 = vunpack.c.l.b16 %v97
    %v327 = vunpack.c.l.b16 %v98
    %v328 = vunpack.c.l.b16 %v99
    %v329 = vunpack.c.l.b16 %v100
    %v330 = vunpack.c.l.b16 %v101
    %v331 = vunpack.c.l.b16 %v102
    %v332 = vunpack.c.l.b16 %v103
    %v333 = vunpack.c.l.b16 %v104
    %v334 = vunpack.c.l.b16 %v105
    %v335 = vunpack.c.l.b16 %v106
    %v336 = vunpack.c.l.b16 %v107
    %v337 = vunpack.c.l.b16 %v108
    %v338 = vunpack.c.l.b16 %v109
    %v339 = vunpack.c.l.b16 %v110
    %v340 = vunpack.c.l.b16 %v111
    %v341 = vunpack.c.l.b16 %v112
    %v342 = vunpack.c.l.b16 %v113
    %v343 = vunpack.c.l.b16 %v114
    %v344 = vunpack.c.l.b16 %v115
    %v345 = vunpack.c.l.b16 %v116
    %v346 = vunpack.c.l.b16 %v117
    %v347 = vunpack.c.l.b16 %v118
    %v348 = vunpack.c.l.b16 %v119
    %v349 = vunpack.c.l.b16 %v120
    %v350 = vunpack.c.l.b16 %v121
    %v351 = vunpack.c.l.b16 %v122
    %v352 = vunpack.c.l.b16 %v123
    %v353 = vunpack.c.l.b16 %v124
    %v354 = vunpack.c.l.b16 %v125
    %v355 = vunpack.c.l.b16 %v126
    %v356 = vunpack.c.l.b16 %v127
    %v357 = vunpack.c.l.b16 %v128
    %v358 = vunpack.c.l.b16 %v129
    %v359 = vunpack.c.l.b16 %v130
    %v360 = vpack.c.b16 %v265, %v264
    %v361 = vpack.c.b16 %v267, %v266
    %v362 = vpack.c.b16 %v269, %v268
    %v363 = vpack.c.b16 %v271, %v270
    %v364 = vpack.c.b16 %v273, %v272
    %v365 = vpack.c.b16 %v275, %v274
    %v366 = vpack.c.b16 %v277, %v276
    %v367 = vpack.c.b16 %v279, %v278
    %v368 = vpack.c.b16 %v281, %v280
    %v369 = vpack.c.b16 %v283, %v282
    %v370 = vpack.c.b16 %v285, %v284
    %v371 = vpack.c.b16 %v287, %v286
    %v372 = vpack.c.b16 %v289, %v288
    %v373 = vpack.c.b16 %v291, %v290
    %v374 = vpack.c.b16 %v293, %v292
    %v375 = vpack.c.b16 %v295, %v294
    %v376 = vpack.c.b16 %v297, %v296
    %v377 = vpack.c.b16 %v299, %v298
    %v378 = vpack.c.b16 %v301, %v300
    %v379 = vpack.c.b16 %v303, %v302
    %v380 = vpack.c.b16 %v305, %v304
    %v381 = vpack.c.b16 %v307, %v306
    %v382 = vpack.c.b16 %v309, %v308
    %v383 = vpack.c.b16 %v311, %v310
    %v384 = vpack.c.b16 %v313, %v312
    %v385 = vpack.c.b16 %v315, %v314
    %v386 = vpack.c.b16 %v317, %v316
    %v387 = vpack.c.b16 %v319, %v318
    %v388 = vpack.c.b16 %v321, %v320
    %v389 = vpack.c.b16 %v323, %v322
    %v390 = vpack.c.b16 %v325, %v324
    %v391 = vpack.c.b16 %v327, %v326
    %v392 = vpack.c.b16 %v329, %v328
    %v393 = vpack.c.b16 %v331, %v330
    %v394 = vpack.c.b16 %v333, %v332
    %v395 = vpack.c.b16 %v335, %v334
    %v396 = vpack.c.b16 %v337, %v336
    %v397 = vpack.c.b16 %v339, %v338
    %v398 = vpack.c.b16 %v341, %v340
    %v399 = vpack.c.b16 %v343, %v342
    %v400 = vpack.c.b16 %v345, %v344
    %v401 = vpack.c.b16 %v347, %v346
    %v402 = vpack.c.b16 %v349, %v348
    %v403 = vpack.c.b16 %v351, %v350
    %v404 = vpack.c.b16 %v353, %v352
    %v405 = vpack.c.b16 %v355, %v354
    %v406 = vpack.c.b16 %v357, %v356
    %v407 = vpack.c.b16 %v359, %v358
    %456 = vmatprep.subr.bf16.mxu0 0
    %457 = vmatpush1.bf16.msra.mxu0 %v367
    %458 = vmatprep.subr.bf16.mxu0 0
    %459 = vmatpush1.bf16.msra.mxu0 %v366
    %460 = vmatprep.subr.bf16.mxu0 0
    %461 = vmatpush1.bf16.msra.mxu0 %v365
    %462 = vmatprep.subr.bf16.mxu0 0
    %463 = vmatpush1.bf16.msra.mxu0 %v364
    %464 = vmatprep.subr.bf16.mxu0 0
    %465 = vmatpush1.bf16.msra.mxu0 %v363
    %466 = vmatprep.subr.bf16.mxu0 0
    %467 = vmatpush1.bf16.msra.mxu0 %v362
    %468 = vmatprep.subr.bf16.mxu0 0
    %469 = vmatpush1.bf16.msra.mxu0 %v361
    %470 = vmatprep.subr.bf16.mxu0 0
    %471 = vmatpush1.bf16.msra.mxu0 %v360
    %472 = vmatprep.subr.bf16.mxu0 0
    %473 = vmatpush2.bf16.msra.mxu0 %v375
    %474 = vmatprep.subr.bf16.mxu0 0
    %475 = vmatpush2.bf16.msra.mxu0 %v374
    %476 = vmatprep.subr.bf16.mxu0 0
    %477 = vmatpush2.bf16.msra.mxu0 %v373
    %478 = vmatprep.subr.bf16.mxu0 0
    %479 = vmatpush2.bf16.msra.mxu0 %v372
    %480 = vmatprep.subr.bf16.mxu0 0
    %481 = vmatpush2.bf16.msra.mxu0 %v371
    %482 = vmatprep.subr.bf16.mxu0 0
    %483 = vmatpush2.bf16.msra.mxu0 %v370
    %484 = vmatprep.subr.bf16.mxu0 0
    %485 = vmatpush2.bf16.msra.mxu0 %v369
    %486 = vmatprep.subr.bf16.mxu0 0
    %487 = vmatpush2.bf16.msra.mxu0 %v368
    %488 = vmatprep.mubr.bf16.mxu0 %v157
    %489 = vmatmul.mubr.bf16.gmra.mxu0 %v156
    %v490 = vpop.f32.mrf.mxu0
    %v491 = vadd.f32 %v136, %v490
    %v492 = vpop.f32.mrf.mxu0
    %v493 = vpop.f32.mrf.mxu0
    %v494 = vadd.f32 %v136, %v493
    %v495 = vpop.f32.mrf.mxu0
    %496 = vdwg.mxu0
    %497 = vmatprep.subr.bf16.mxu0 0
    %498 = vmatpush1.bf16.msra.mxu0 %v383
    %499 = vmatprep.subr.bf16.mxu0 0
    %500 = vmatpush1.bf16.msra.mxu0 %v382
    %501 = vmatprep.subr.bf16.mxu0 0
    %502 = vmatpush1.bf16.msra.mxu0 %v381
    %503 = vmatprep.subr.bf16.mxu0 0
    %504 = vmatpush1.bf16.msra.mxu0 %v380
    %505 = vmatprep.subr.bf16.mxu0 0
    %506 = vmatpush1.bf16.msra.mxu0 %v379
    %507 = vmatprep.subr.bf16.mxu0 0
    %508 = vmatpush1.bf16.msra.mxu0 %v378
    %509 = vmatprep.subr.bf16.mxu0 0
    %510 = vmatpush1.bf16.msra.mxu0 %v377
    %511 = vmatprep.subr.bf16.mxu0 0
    %512 = vmatpush1.bf16.msra.mxu0 %v376
    %513 = vmatprep.subr.bf16.mxu0 0
    %514 = vmatpush2.bf16.msra.mxu0 %v391
    %515 = vmatprep.subr.bf16.mxu0 0
    %516 = vmatpush2.bf16.msra.mxu0 %v390
    %517 = vmatprep.subr.bf16.mxu0 0
    %518 = vmatpush2.bf16.msra.mxu0 %v389
    %519 = vmatprep.subr.bf16.mxu0 0
    %520 = vmatpush2.bf16.msra.mxu0 %v388
    %521 = vmatprep.subr.bf16.mxu0 0
    %522 = vmatpush2.bf16.msra.mxu0 %v387
    %523 = vmatprep.subr.bf16.mxu0 0
    %524 = vmatpush2.bf16.msra.mxu0 %v386
    %525 = vmatprep.subr.bf16.mxu0 0
    %526 = vmatpush2.bf16.msra.mxu0 %v385
    %527 = vmatprep.subr.bf16.mxu0 0
    %528 = vmatpush2.bf16.msra.mxu0 %v384
    %529 = vmatprep.mubr.bf16.mxu0 %v159
    %530 = vmatmul.mubr.bf16.gmra.mxu0 %v158
    %v531 = vpop.f32.mrf.mxu0
    %v532 = vadd.f32 %v491, %v531
    %v533 = vpop.f32.mrf.mxu0
    %v534 = vpop.f32.mrf.mxu0
    %v535 = vadd.f32 %v494, %v534
    %v536 = vpop.f32.mrf.mxu0
    %537 = vdwg.mxu0
    %538 = vmatprep.subr.bf16.mxu0 0
    %539 = vmatpush1.bf16.msra.mxu0 %v399
    %540 = vmatprep.subr.bf16.mxu0 0
    %541 = vmatpush1.bf16.msra.mxu0 %v398
    %542 = vmatprep.subr.bf16.mxu0 0
    %543 = vmatpush1.bf16.msra.mxu0 %v397
    %544 = vmatprep.subr.bf16.mxu0 0
    %545 = vmatpush1.bf16.msra.mxu0 %v396
    %546 = vmatprep.subr.bf16.mxu0 0
    %547 = vmatpush1.bf16.msra.mxu0 %v395
    %548 = vmatprep.subr.bf16.mxu0 0
    %549 = vmatpush1.bf16.msra.mxu0 %v394
    %550 = vmatprep.subr.bf16.mxu0 0
    %551 = vmatpush1.bf16.msra.mxu0 %v393
    %552 = vmatprep.subr.bf16.mxu0 0
    %553 = vmatpush1.bf16.msra.mxu0 %v392
    %554 = vmatprep.subr.bf16.mxu0 0
    %555 = vmatpush2.bf16.msra.mxu0 %v407
    %556 = vmatprep.subr.bf16.mxu0 0
    %557 = vmatpush2.bf16.msra.mxu0 %v406
    %558 = vmatprep.subr.bf16.mxu0 0
    %559 = vmatpush2.bf16.msra.mxu0 %v405
    %560 = vmatprep.subr.bf16.mxu0 0
    %561 = vmatpush2.bf16.msra.mxu0 %v404
    %562 = vmatprep.subr.bf16.mxu0 0
    %563 = vmatpush2.bf16.msra.mxu0 %v403
    %564 = vmatprep.subr.bf16.mxu0 0
    %565 = vmatpush2.bf16.msra.mxu0 %v402
    %566 = vmatprep.subr.bf16.mxu0 0
    %567 = vmatpush2.bf16.msra.mxu0 %v401
    %568 = vmatprep.subr.bf16.mxu0 0
    %569 = vmatpush2.bf16.msra.mxu0 %v400
    %570 = vmatprep.mubr.bf16.mxu0 %v161
    %571 = vmatmul.mubr.bf16.gmra.mxu0 %v160
    %v572 = vpop.f32.mrf.mxu0
    %v573 = vadd.f32 %v532, %v572
    %v574 = vpop.f32.mrf.mxu0
    %v575 = vpop.f32.mrf.mxu0
    %v576 = vadd.f32 %v535, %v575
    %v577 = vpop.f32.mrf.mxu0
    %578 = vdwg.mxu0
    %579 = vst [vmem:[%s3] sm:$0xff] %v573
    %580 = vst [vmem:[%s3 + $0x8] sm:$0xff] %v576
    // Predicated region
    $region18: #{model_norm_wrapper_forward.1} parent=1 // pred_check
      _
    $region19: #{model_norm_wrapper_forward.1} parent=1 // pred_check_branch
      %582 = sbr.rel (0) target = $region21
    $region20: #{model_norm_wrapper_forward.1} parent=1 // pred_region
      _
    $region21: #{model_norm_wrapper_forward.1} parent=1 // pred_fallthru
      _
    // Predicated region
    $region22: #{model_norm_wrapper_forward.1} parent=1 // pred_check
      _
    $region23: #{model_norm_wrapper_forward.1} parent=1 // pred_check_branch
      %584 = sbr.rel (0) target = $region25
    $region24: #{model_norm_wrapper_forward.1} parent=1 // pred_region
      _
    $region25: #{model_norm_wrapper_forward.1} parent=1 // pred_fallthru
      _
    %585 = vsyncpa [#allocation3], 1

</llo_original>
